<compile_context>
chip_gen: v7x
topology: tpu7x:2x2x1
jax: 0.10.0
libtpu: 0.0.40
codegen_flags: <defaults>
</compile_context>

<pallas_src>
import jax
import jax.numpy as jnp
from jax.experimental import pallas as pl
from jax.experimental.pallas import tpu as pltpu


def _lca_kernel(cond_ref, x_ref, o_ref):
    # cond_ref: (TILE_R, 1)   x_ref / o_ref: (TILE_R, TILE_S)
    # The (TILE_R, 1) conditioning column broadcasts along the lane axis (S).
    z = x_ref[...] + cond_ref[...]
    o_ref[...] = jnp.maximum(z, 0).astype(o_ref.dtype)   # pointwise activation (ReLU)


def _pick_tiles(R, S, itemsize, target_block_bytes):
    """Pick (TILE_R, TILE_S) for the flattened (R, S) problem.

    Lane axis first: full S if it fits the budget (a full-dim block is always
    legal w.r.t. the (8,128) constraint), else the largest multiple of 128
    that fits. Remaining budget goes to rows: full R, or a multiple of the
    sublane packing granule (8 for f32, 16 for bf16, 32 for int8).
    """
    sub = 8 * max(1, 4 // itemsize)   # rows per sublane granule

    if S <= 128:
        tile_s = S
    else:
        budget_lanes = max(
            128, (target_block_bytes // max(1, sub * itemsize)) // 128 * 128
        )
        tile_s = S if budget_lanes >= S else int(budget_lanes)

    rows_budget = max(sub, target_block_bytes // max(1, tile_s * itemsize))
    if R <= rows_budget:
        tile_r = R                      # full dim is always legal
    else:
        tile_r = int((rows_budget // sub) * sub)
    return tile_r, tile_s


def linear_conditioned_activation(
    x_ncdhw, y, w, b, *,
    target_block_bytes=8 << 20,     # 12-16 MiB on v5e/v6e, <= ~10-12 MiB on v7x
    vmem_limit_bytes=48 << 20,      # 64<<20 on v5e/v6e if pushing block size
):
    """x_ncdhw: (B, C, D, H, W), y: (B, cond_dim), w: (cond_dim, C), b: (C,)."""
    B, C, D, H, W = x_ncdhw.shape
    S = D * H * W
    R = B * C
    dtype = x_ncdhw.dtype
    itemsize = jnp.dtype(dtype).itemsize

    # Free reshape: NCDHW is contiguous over (C, D, H, W) -> (B*C, D*H*W).
    x_rs = x_ncdhw.reshape(R, S)

    # Tiny conditioning matmul in plain JAX; result is only (B, C).
    cond = jnp.dot(y, w, preferred_element_type=jnp.float32) + b.astype(jnp.float32)
    cond = cond.astype(dtype).reshape(R, 1)

    TILE_R, TILE_S = _pick_tiles(R, S, itemsize, target_block_bytes)
    grid = (pl.cdiv(R, TILE_R), pl.cdiv(S, TILE_S))

    out_rs = pl.pallas_call(
        _lca_kernel,
        out_shape=jax.ShapeDtypeStruct((R, S), dtype),
        grid_spec=pltpu.PrefetchScalarGridSpec(
            num_scalar_prefetch=0,
            grid=grid,
            in_specs=[
                pl.BlockSpec((TILE_R, 1), lambda ri, si: (ri, 0)),        # cond column
                pl.BlockSpec((TILE_R, TILE_S), lambda ri, si: (ri, si)),  # x tile
            ],
            out_specs=pl.BlockSpec((TILE_R, TILE_S), lambda ri, si: (ri, si)),
        ),
        compiler_params=pltpu.CompilerParams(
            dimension_semantics=("parallel", "parallel"),
            vmem_limit_bytes=vmem_limit_bytes,
        ),
    )(cond, x_rs)

    return out_rs.reshape(B, C, D, H, W)


def _reference(x, y, w, b):
    cond = y @ w + b
    return jnp.maximum(x + cond[:, :, None, None, None], 0.0)


def _run_case(key, B, C, D, H, W, cond_dim, **kw):
    kx, ky, kw_, kb = jax.random.split(key, 4)
    x = jax.random.normal(kx, (B, C, D, H, W), dtype=jnp.float32)
    y = jax.random.normal(ky, (B, cond_dim), dtype=jnp.float32)
    w = jax.random.normal(kw_, (cond_dim, C), dtype=jnp.float32) * 0.1
    b = jax.random.normal(kb, (C,), dtype=jnp.float32) * 0.1

    out = jax.block_until_ready(linear_conditioned_activation(x, y, w, b, **kw))
    ref = _reference(x, y, w, b)
    assert out.shape == (B, C, D, H, W)
    assert jnp.allclose(out, ref, atol=1e-5), "mismatch vs reference"


if __name__ == "__main__":
    key = jax.random.PRNGKey(0)
    k1, k2, k3 = jax.random.split(key, 3)

    # Case 1: small spatial volume (S = 64 < 128 -> single block, full rows).
    _run_case(k1, B=2, C=16, D=4, H=4, W=4, cond_dim=8)

    # Case 2: S = 512, tiny block budget to exercise row + spatial tiling
    # (TILE_R = 8 of R = 16, TILE_S = 128 of S = 512 -> 2x4 grid).
    _run_case(k2, B=2, C=8, D=8, H=8, W=8, cond_dim=8, target_block_bytes=4096)

    # Case 3: ragged spatial extent (S = 210, TILE_S = 128 -> partial last tile).
    _run_case(k3, B=1, C=8, D=5, H=6, W=7, cond_dim=8, target_block_bytes=4096)

    print("KERNEL_OK")
</pallas_src>

<mosaic_0001>
module attributes {stable_mosaic.version = 11 : i64} {
  func.func @_lca_kernel(%arg0: i32, %arg1: i32, %arg2: memref<32x1xf32, #tpu.memory_space<vmem>>, %arg3: memref<32x64xf32, #tpu.memory_space<vmem>>, %arg4: memref<32x64xf32, #tpu.memory_space<vmem>>) attributes {dimension_semantics = [#tpu.dimension_semantics<parallel>, #tpu.dimension_semantics<parallel>], iteration_bounds = array<i64: 1, 1>, scalar_prefetch = 0 : i64, scratch_operands = 0 : i64, tpu.core_type = #tpu.core_type<tc>, window_params = [{transform_indices = @transform_0, window_bounds = array<i64: 32, 1>}, {transform_indices = @transform_1, window_bounds = array<i64: 32, 64>}, {transform_indices = @transform_2, window_bounds = array<i64: 32, 64>}]} {
    %c0 = arith.constant 0 : index
    %c0_0 = arith.constant 0 : index
    %0 = vector.load %arg3[%c0, %c0_0] : memref<32x64xf32, #tpu.memory_space<vmem>>, vector<32x64xf32>
    %c0_1 = arith.constant 0 : index
    %c0_2 = arith.constant 0 : index
    %1 = vector.load %arg2[%c0_1, %c0_2] : memref<32x1xf32, #tpu.memory_space<vmem>>, vector<32x1xf32>
    %2 = vector.broadcast %1 : vector<32x1xf32> to vector<32x64xf32>
    %3 = arith.addf %0, %2 : vector<32x64xf32>
    %cst = arith.constant 0.000000e+00 : f32
    %4 = vector.broadcast %cst : f32 to vector<32x64xf32>
    %5 = arith.maximumf %3, %4 : vector<32x64xf32>
    %c0_3 = arith.constant 0 : index
    %c0_4 = arith.constant 0 : index
    %6 = vector.load %arg4[%c0_3, %c0_4] : memref<32x64xf32, #tpu.memory_space<vmem>>, vector<32x64xf32>
    tpu.vector_store %arg4[%c0_3, %c0_4], %5 {strides = array<i32>} : memref<32x64xf32, #tpu.memory_space<vmem>>, vector<32x64xf32>,
    return
  }
  func.func @transform_0(%arg0: i32, %arg1: i32) -> (i32, i32) {
    %c0_i32 = arith.constant 0 : i32
    %c0_i32_0 = arith.constant 0 : i32
    return %arg0, %c0_i32 : i32, i32
  }
  func.func @transform_1(%arg0: i32, %arg1: i32) -> (i32, i32) {
    %c0_i32 = arith.constant 0 : i32
    return %arg0, %arg1 : i32, i32
  }
  func.func @transform_2(%arg0: i32, %arg1: i32) -> (i32, i32) {
    %c0_i32 = arith.constant 0 : i32
    return %arg0, %arg1 : i32, i32
  }
}

</mosaic_0001>

<llo_original>
// kernel: tpu_custom_call.1
$region0: #{tpu_custom_call.1}
  #allocation0 [shape = 'u32[]', space=smem, size = 0x4, offset = 0x4, fixed_abs, tag = 'smem constant byte address 0x4 - core index']
  #allocation1 [shape = 'u32[144,128]{1,0:T(1,128)}', space=vmem, size = 0x12000, scoped, tag = 'internal scratch']
  %s0 = inlined_call_operand.vmem [shape: f32[32,1], index: 0, kind: input, shape index: {}]
  %s1 = inlined_call_operand.vmem [shape: f32[32,64], index: 1, kind: input, shape index: {}]
  %s2 = inlined_call_operand.hbm [shape: f32[32,64], index: 2, kind: output, shape index: {}]
  %s3 = sld [smem:[#allocation0]]
  $region18: #{tpu_custom_call.1} parent=0
    _
  %s5 = ssub.s32 1, %s3
  %s6 = scalar_select 0, %s5, %s3
  $region1: #{tpu_custom_call.1} parent=0
    #allocation2 [shape = 'u8[16384]{0}', space=vmem, size = 0x4000, scoped, tag = 'output window, operand 0, single buffered']
    #allocation3 [shape = 's32[1]{0}', space=sflag, size = 0x4, scoped, tag = 'scoped memory for tpu_custom_call.1']
    %7 = vsyncpa [#allocation3], 0
    // Predicated region
    $region2: #{tpu_custom_call.1} parent=1 // pred_check
      _
    $region3: #{tpu_custom_call.1} parent=1 // pred_check_branch
      %9 = sbr.rel (0) target = $region5
    $region4: #{tpu_custom_call.1} parent=1 // pred_region
      _
    $region5: #{tpu_custom_call.1} parent=1 // pred_fallthru
      _
    // Predicated region
    $region6: #{tpu_custom_call.1} parent=1 // pred_check
      _
    $region7: #{tpu_custom_call.1} parent=1 // pred_check_branch
      %11 = sbr.rel (0) target = $region9
    $region8: #{tpu_custom_call.1} parent=1 // pred_region
      _
    $region9: #{tpu_custom_call.1} parent=1 // pred_fallthru
      _
    %v12 = vld [vmem:[%s1] sm:$0xff]
    %v13 = vld [vmem:[%s1 + $0x8] sm:$0xff]
    %v14 = vld [vmem:[%s1 + $0x10] sm:$0xff]
    %v15 = vld [vmem:[%s1 + $0x18] sm:$0xff]
    %v16 = vld [vmem:[%s0] sm:$0xff]
    %v17 = vld [vmem:[%s0 + $0x8] sm:$0xff]
    %v18 = vld [vmem:[%s0 + $0x10] sm:$0xff]
    %v19 = vld [vmem:[%s0 + $0x18] sm:$0xff]
    %21 = vset.pattern.permute.xlu0 0
    %22 = vperm.xlu0 %21, %v16
    %v23 = vpop.permute.xlu0 %22
    %26 = vset.pattern.permute.xlu0 0
    %27 = vperm.xlu0 %26, %v17
    %v28 = vpop.permute.xlu0 %27
    %31 = vset.pattern.permute.xlu0 0
    %32 = vperm.xlu0 %31, %v18
    %v33 = vpop.permute.xlu0 %32
    %36 = vset.pattern.permute.xlu0 0
    %37 = vperm.xlu0 %36, %v19
    %v38 = vpop.permute.xlu0 %37
    %v40 = vadd.f32 %v12, %v23
    %v41 = vadd.f32 %v13, %v28
    %v42 = vadd.f32 %v14, %v33
    %v43 = vadd.f32 %v15, %v38
    %v44 = vmax.f32 %v40, 0.0
    %v45 = vmax.f32 %v41, 0.0
    %v46 = vmax.f32 %v42, 0.0
    %v47 = vmax.f32 %v43, 0.0
    %vm48 = vcmask 523264
    %49 = vst.msk [vmem:[#allocation2] sm:$0xff] %vm48, %v44
    %50 = vst.msk [vmem:[#allocation2 + $0x8] sm:$0xff] %vm48, %v45
    %51 = vst.msk [vmem:[#allocation2 + $0x10] sm:$0xff] %vm48, %v46
    %52 = vst.msk [vmem:[#allocation2 + $0x18] sm:$0xff] %vm48, %v47
    // Predicated region
    $region10: #{tpu_custom_call.1} parent=1 // pred_check
      _
    $region11: #{tpu_custom_call.1} parent=1 // pred_check_branch
      %54 = sbr.rel (0) target = $region13
    $region12: #{tpu_custom_call.1} parent=1 // pred_region
      %s56 = ssub.s32 512, 512
      %57 = vsyncadd [#allocation3], %s56
      %s58 = sshll.u32 [#allocation2], 4
      %s59 = int_to_ptr.vmem [resolvable:$true] %s58
      %64 = dma.vmem_to_hbm [thread:$0]  %s59, 512, %s2, [#allocation3], 128, 128, 8
    $region13: #{tpu_custom_call.1} parent=1 // pred_fallthru
      _
    // Predicated region
    $region14: #{tpu_custom_call.1} parent=1 // pred_check
      _
    $region15: #{tpu_custom_call.1} parent=1 // pred_check_branch
      %66 = sbr.rel (0) target = $region17
    $region16: #{tpu_custom_call.1} parent=1 // pred_region
      %67 = dma.done [#allocation3], 512
    $region17: #{tpu_custom_call.1} parent=1 // pred_fallthru
      _
    %68 = vsyncpa [#allocation3], 1

</llo_original>
